<compile_context>
chip_gen: v7x
topology: tpu7x:2x2x1
jax: 0.10.0
libtpu: 0.0.40
codegen_flags: <defaults>
</compile_context>

<pallas_src>
import functools
import math

import jax
import jax.numpy as jnp
from jax import lax
from jax.experimental import pallas as pl
from jax.experimental.pallas import tpu as pltpu


# ----------------------------------------------------------------------------
# Kernels
# ----------------------------------------------------------------------------
def _linear_kernel(x_ref, w_ref, b_ref, o_ref):
    # x_ref: (tm, C_in)   w_ref: (C_out, C_in)   b_ref: (C_out, 1)
    # o_ref: (C_out, tm)  -- lane-dense output block.
    acc = lax.dot_general(
        w_ref[...], x_ref[...],
        dimension_numbers=(((1,), (1,)), ((), ())),   # contract C_in with C_in
        preferred_element_type=jnp.float32,
    )
    o_ref[...] = (acc + b_ref[...]).astype(o_ref.dtype)


def _linear_kernel_ktiled(x_ref, w_ref, b_ref, o_ref, acc_ref, *, c_in, tk):
    # x_ref: (tm, tk)   w_ref: (C_out, tk)   b_ref: (C_out, 1)
    # o_ref: (C_out, tm)   acc_ref: (C_out, tm) f32 scratch.
    k = pl.program_id(2)
    nk = pl.num_programs(2)

    @pl.when(k == 0)
    def _():
        acc_ref[...] = jnp.zeros_like(acc_ref)

    x = x_ref[...]
    w = w_ref[...]
    rem = c_in % tk
    if rem != 0:
        # Last K block is partial: zero BOTH operands' out-of-range C_in
        # columns so stale VMEM (possibly NaN/Inf) cannot reach the accumulator.
        valid = jnp.where(k == nk - 1, rem, tk)
        col_x = lax.broadcasted_iota(jnp.int32, x.shape, 1)
        col_w = lax.broadcasted_iota(jnp.int32, w.shape, 1)
        x = jnp.where(col_x < valid, x, jnp.zeros_like(x))
        w = jnp.where(col_w < valid, w, jnp.zeros_like(w))

    acc_ref[...] += lax.dot_general(
        w, x,
        dimension_numbers=(((1,), (1,)), ((), ())),
        preferred_element_type=jnp.float32,
    )

    @pl.when(k == nk - 1)
    def _():
        o_ref[...] = (acc_ref[...] + b_ref[...]).astype(o_ref.dtype)


# ----------------------------------------------------------------------------
# Tile planning (generation-aware)
# ----------------------------------------------------------------------------
def _vmem_limit_bytes():
    """Scoped VMEM to reserve: ~0.7x physical, capped at 64 MiB.

    v5e/v6e (128 MiB physical) -> 64 MiB; v7x (64 MiB physical) -> ~44 MiB,
    leaving headroom for Mosaic internal scratch.  Falls back to the most
    conservative (v7x) assumption if the query is unavailable.
    """
    phys = 64 * 1024 * 1024
    try:
        info = pltpu.get_tpu_info()
        phys = int(getattr(info, "vmem_capacity_bytes", phys)) or phys
    except Exception:  # pragma: no cover - query unavailable (e.g. interpret)
        pass
    return min(int(phys * 0.70), 64 * 1024 * 1024)


def _plan_tiles(s, c_in, c_out, itemsize, budget, tm_cap=None):
    """Pick (tm, tk).  tk == c_in -> simple path (whole weight VMEM-resident,
    single-buffered); tk < c_in -> K-tiled path with an f32 accumulator."""
    lane = 128
    s128 = -(-s // lane) * lane
    tm_hi = s128 if tm_cap is None else min(s128, max(lane, (tm_cap // lane) * lane))

    def tm_for(avail_bytes, bytes_per_row):
        if avail_bytes < lane * bytes_per_row:
            return lane
        return min(((avail_bytes // bytes_per_row) // lane) * lane, tm_hi)

    # --- simple path: single-buffered full weight + bias ---------------------
    fixed_simple = (c_in + 1) * c_out * itemsize
    per_row_simple = 2 * (c_in + c_out) * itemsize      # dbl-buffered x & out tiles
    fits_simple = (budget - fixed_simple) >= lane * per_row_simple
    tm_simple = tm_for(budget - fixed_simple, per_row_simple)

    if fits_simple and tm_simple >= min(tm_hi, 1024):
        return tm_simple, c_in

    # --- K-tiled path: stream the weight in (C_out, tk) slices ---------------
    # TODO(synk): also tile C_out for layers where even a (C_out, 128) output
    # block exceeds the budget; not needed for this module's channel counts.
    if c_in <= lane:
        return (tm_simple if fits_simple else lane), c_in

    tk = min((c_in // lane) * lane,
             max(lane, (((budget // 4) // (2 * c_out * itemsize)) // lane) * lane))
    if tk >= c_in:
        return (tm_simple if fits_simple else lane), c_in

    fixed_kt = (2 * c_out * tk + c_out) * itemsize       # dbl-buf weight + bias
    per_row_kt = 2 * tk * itemsize + 2 * c_out * itemsize + 4 * c_out  # x + out + acc
    tm_kt = tm_for(budget - fixed_kt, per_row_kt)
    return tm_kt, tk


# ----------------------------------------------------------------------------
# Wrapper
# ----------------------------------------------------------------------------
@functools.partial(jax.jit, static_argnames=("tm_cap",))
def linear_transform(x, weight, bias, *, tm_cap=None):
    """Pallas implementation of LinearTransform.forward.

    x:      [N, ..., C_in]   (channels last)
    weight: [C_out, C_in]    (PyTorch nn.Linear convention)
    bias:   [C_out]
    returns [N, C_out, ...]  (channels moved to axis 1)
    """
    c_out, c_in = weight.shape
    n = x.shape[0]
    mid_shape = x.shape[1:-1]
    s = int(math.prod(mid_shape)) if mid_shape else 1

    x3d = x.reshape(n, s, c_in)                          # [N, S, C_in]
    b2d = bias.reshape(c_out, 1)                         # broadcast over tm lanes

    itemsize = jnp.dtype(x.dtype).itemsize
    vmem_limit = _vmem_limit_bytes()
    budget = int(vmem_limit * 0.65)
    tm, tk = _plan_tiles(s, c_in, c_out, itemsize, budget, tm_cap)

    # v7x has 2 TensorCores and both grid axes are "parallel": make sure at
    # least 2 programs exist so neither core idles.  No-op on v5e/v6e.
    while tm > 128 and n * pl.cdiv(s, tm) < 2:
        tm = max(128, ((tm // 2) // 128) * 128)

    cost = pl.CostEstimate(
        flops=2 * n * s * c_in * c_out,
        transcendentals=0,
        bytes_accessed=(n * s * c_in + c_out * c_in + c_out + n * s * c_out) * itemsize,
    )

    if tk >= c_in:
        # Simple path: whole weight resident once, no reduction axis.
        out3d = pl.pallas_call(
            _linear_kernel,
            out_shape=jax.ShapeDtypeStruct((n, c_out, s), x.dtype),
            grid=(n, pl.cdiv(s, tm)),
            in_specs=[
                pl.BlockSpec((None, tm, c_in), lambda i, j: (i, j, 0)),
                pl.BlockSpec((c_out, c_in), lambda i, j: (0, 0),
                             pipeline_mode=pl.Buffered(1)),
                pl.BlockSpec((c_out, 1), lambda i, j: (0, 0),
                             pipeline_mode=pl.Buffered(1)),
            ],
            out_specs=pl.BlockSpec((None, c_out, tm), lambda i, j: (i, 0, j)),
            compiler_params=pltpu.CompilerParams(
                dimension_semantics=("parallel", "parallel"),
                vmem_limit_bytes=vmem_limit,
            ),
            cost_estimate=cost,
        )(x3d, weight, b2d)
    else:
        # Large-weight path: tile C_in as a trailing reduction axis.
        kernel = functools.partial(_linear_kernel_ktiled, c_in=c_in, tk=tk)
        out3d = pl.pallas_call(
            kernel,
            out_shape=jax.ShapeDtypeStruct((n, c_out, s), x.dtype),
            grid=(n, pl.cdiv(s, tm), pl.cdiv(c_in, tk)),
            in_specs=[
                pl.BlockSpec((None, tm, tk), lambda i, j, k: (i, j, k)),
                pl.BlockSpec((c_out, tk), lambda i, j, k: (0, k)),
                pl.BlockSpec((c_out, 1), lambda i, j, k: (0, 0),
                             pipeline_mode=pl.Buffered(1)),
            ],
            out_specs=pl.BlockSpec((None, c_out, tm), lambda i, j, k: (i, 0, j)),
            scratch_shapes=[pltpu.VMEM((c_out, tm), jnp.float32)],
            compiler_params=pltpu.CompilerParams(
                dimension_semantics=("parallel", "parallel", "arbitrary"),
                vmem_limit_bytes=vmem_limit,
            ),
            cost_estimate=cost,
        )(x3d, weight, b2d)

    # Output is already [N, C_out, S]: channels-first, only a reshape remains.
    return out3d.reshape((n, c_out) + mid_shape)


# ----------------------------------------------------------------------------
# Self-test
# ----------------------------------------------------------------------------
if __name__ == "__main__":
    key = jax.random.PRNGKey(0)
    k_x, k_w, k_b = jax.random.split(key, 3)

    N, H, W, C_IN, C_OUT = 2, 8, 16, 32, 64
    x = jax.random.normal(k_x, (N, H, W, C_IN), dtype=jnp.float32)
    # Deterministic synthetic parameters (nn.Linear: weight [C_out, C_in], bias [C_out]).
    weight = jax.random.normal(k_w, (C_OUT, C_IN), dtype=jnp.float32) * 0.05
    bias = jax.random.normal(k_b, (C_OUT,), dtype=jnp.float32) * 0.05

    out = linear_transform(x, weight, bias)
    jax.block_until_ready(out)

    ref = jnp.einsum("nhwc,oc->nhwo", x, weight) + bias
    ref = jnp.transpose(ref, (0, 3, 1, 2))
    assert out.shape == (N, C_OUT, H, W), out.shape
    assert jnp.allclose(out, ref, atol=1e-4, rtol=1e-4)

    # Second check: non-lane-multiple spatial extent exercises the masked
    # partial-tile writeback path.
    x2 = jax.random.normal(k_x, (2, 5, 7, C_IN), dtype=jnp.float32)
    out2 = linear_transform(x2, weight, bias)
    jax.block_until_ready(out2)
    ref2 = jnp.transpose(jnp.einsum("nhwc,oc->nhwo", x2, weight) + bias, (0, 3, 1, 2))
    assert out2.shape == (2, C_OUT, 5, 7), out2.shape
    assert jnp.allclose(out2, ref2, atol=1e-4, rtol=1e-4)

    print("KERNEL_OK")
</pallas_src>

<mosaic_0001>
module attributes {stable_mosaic.version = 11 : i64} {
  func.func @_linear_kernel(%arg0: i32, %arg1: i32, %arg2: memref<1x128x32xf32, #tpu.memory_space<vmem>>, %arg3: memref<64x32xf32, #tpu.memory_space<vmem>>, %arg4: memref<64x1xf32, #tpu.memory_space<vmem>>, %arg5: memref<1x64x128xf32, #tpu.memory_space<vmem>>) attributes {dimension_semantics = [#tpu.dimension_semantics<parallel>, #tpu.dimension_semantics<parallel>], iteration_bounds = array<i64: 2, 1>, scalar_prefetch = 0 : i64, scratch_operands = 0 : i64, tpu.core_type = #tpu.core_type<tc>, window_params = [{transform_indices = @transform_0, window_bounds = array<i64: 1, 128, 32>}, {pipeline_mode = #tpu.pipeline_mode<synchronous>, transform_indices = @transform_1, window_bounds = array<i64: 64, 32>}, {pipeline_mode = #tpu.pipeline_mode<synchronous>, transform_indices = @transform_2, window_bounds = array<i64: 64, 1>}, {transform_indices = @transform_3, window_bounds = array<i64: 1, 64, 128>}]} {
    %c0 = arith.constant 0 : index
    %c0_0 = arith.constant 0 : index
    %0 = vector.load %arg3[%c0, %c0_0] : memref<64x32xf32, #tpu.memory_space<vmem>>, vector<64x32xf32>
    %c0_1 = arith.constant 0 : index
    %c0_2 = arith.constant 0 : index
    %c0_3 = arith.constant 0 : index
    %1 = vector.load %arg2[%c0_1, %c0_2, %c0_3] : memref<1x128x32xf32, #tpu.memory_space<vmem>>, vector<1x128x32xf32>
    %2 = vector.shape_cast %1 : vector<1x128x32xf32> to vector<128x32xf32>
    %cst = arith.constant dense<0.000000e+00> : vector<64x128xf32>
    %3 = tpu.matmul %0, %2, %cst {dimension_numbers = #tpu.dot_dimension_numbers<[1], [1], [0], [0], [0, 0, 1, 0], [], []>} : vector<64x32xf32>, vector<128x32xf32>, vector<64x128xf32> -> vector<64x128xf32>
    %c0_4 = arith.constant 0 : index
    %c0_5 = arith.constant 0 : index
    %4 = vector.load %arg4[%c0_4, %c0_5] : memref<64x1xf32, #tpu.memory_space<vmem>>, vector<64x1xf32>
    %5 = vector.broadcast %4 : vector<64x1xf32> to vector<64x128xf32>
    %6 = arith.addf %3, %5 : vector<64x128xf32>
    %c0_6 = arith.constant 0 : index
    %c0_7 = arith.constant 0 : index
    %c0_8 = arith.constant 0 : index
    %7 = vector.load %arg5[%c0_6, %c0_7, %c0_8] : memref<1x64x128xf32, #tpu.memory_space<vmem>>, vector<1x64x128xf32>
    %8 = vector.shape_cast %7 : vector<1x64x128xf32> to vector<64x128xf32>
    %9 = vector.shape_cast %6 : vector<64x128xf32> to vector<1x64x128xf32>
    tpu.vector_store %arg5[%c0_6, %c0_7, %c0_8], %9 {strides = array<i32>} : memref<1x64x128xf32, #tpu.memory_space<vmem>>, vector<1x64x128xf32>,
    return
  }
  func.func @transform_0(%arg0: i32, %arg1: i32) -> (i32, i32, i32) {
    %c0_i32 = arith.constant 0 : i32
    %c0_i32_0 = arith.constant 0 : i32
    return %arg0, %arg1, %c0_i32 : i32, i32, i32
  }
  func.func @transform_1(%arg0: i32, %arg1: i32) -> (i32, i32) {
    %c0_i32 = arith.constant 0 : i32
    %c0_i32_0 = arith.constant 0 : i32
    %c0_i32_1 = arith.constant 0 : i32
    return %c0_i32, %c0_i32_0 : i32, i32
  }
  func.func @transform_2(%arg0: i32, %arg1: i32) -> (i32, i32) {
    %c0_i32 = arith.constant 0 : i32
    %c0_i32_0 = arith.constant 0 : i32
    %c0_i32_1 = arith.constant 0 : i32
    return %c0_i32, %c0_i32_0 : i32, i32
  }
  func.func @transform_3(%arg0: i32, %arg1: i32) -> (i32, i32, i32) {
    %c0_i32 = arith.constant 0 : i32
    %c0_i32_0 = arith.constant 0 : i32
    return %arg0, %c0_i32, %arg1 : i32, i32, i32
  }
}

</mosaic_0001>

<llo_original>
// kernel: linear_transform.1
$region0: #{linear_transform.1}
  #allocation0 [shape = 'u32[]', space=smem, size = 0x4, offset = 0x4, fixed_abs, tag = 'smem constant byte address 0x4 - core index']
  #allocation1 [shape = 'u32[144,128]{1,0:T(1,128)}', space=vmem, size = 0x12000, scoped, tag = 'internal scratch']
  %s0 = inlined_call_operand.hbm [shape: f32[2,128,32], index: 0, kind: input, shape index: {}]
  %s1 = inlined_call_operand.vmem [shape: f32[64,32], index: 1, kind: input, shape index: {}]
  %s2 = inlined_call_operand.vmem [shape: f32[64,1], index: 2, kind: input, shape index: {}]
  %s3 = inlined_call_operand.vmem [shape: f32[2,64,128], index: 3, kind: output, shape index: {}]
  %s4 = sld [smem:[#allocation0]]
  $region49: #{linear_transform.1} parent=0
    _
  %s6 = ssub.s32 1, %s4
  %s7 = scalar_select 0, %s6, %s4
  $region1: #{linear_transform.1} parent=0
    #allocation2 [shape = 'u8[131072]{0}', space=vmem, size = 0x20000, scoped, tag = 'input window, operand 0']
    #allocation3 [shape = 's32[2]{0}', space=sflag, size = 0x8, scoped, tag = 'scoped memory for linear_transform.1']
    %8 = vsyncpa [#allocation3], 0
    %s9 = scalar_lea.sflag [#allocation3], 1
    %10 = vsyncpa %s9, 0
    loop: start=0, step=1, limit=4
    $region2: #{linear_transform.1} parent=1 // loop_pre_header
      _
    $region3: #{linear_transform.1} parent=1 // loop_header
      %s12 = sphi 0, %s16
      %p13 = scmp.ge.s32.totalorder %s12, 4
      %s19 = sphi 0, %s31
      %s20 = sphi 0, %s27
      %s21 = sphi 0, %s19
      %s22 = sphi 0, %s20
      %s23 = sphi 0, %s21
      %s24 = sphi 0, %s22
      %s36 = sphi 0, %s38
      %s39 = sphi 0, %s36
      %s40 = sphi 0, %s39
      %s56 = sphi 0, %s40
      %s60 = sphi 0, %s60
      %s62 = sphi 0, %s60
      %s63 = sphi 0, %s62
      %s77 = sphi 0, %s63
      %s81 = sphi 0, %s81
      %s83 = sphi 0, %s81
      %s84 = sphi 0, %s83
      %s98 = sphi 0, %s84
      %s106 = sphi 0, %s108
      %s109 = sphi 0, %s106
      %s110 = sphi 0, %s109
      %s126 = sphi 0, %s110
    $region4: #{linear_transform.1} parent=1 // loop_header_branch
      %15 = sbr.rel (%p13) target = $region8
    $region5: #{linear_transform.1} parent=1 // loop_body
      %s17 = ssub.s32 %s12, 1
      %s18 = ssub.s32 %s12, 2
      %s25 = sadd.s32 1, %s20
      %p26 = scmp.ge.s32.totalorder %s25, 1
      %s27 = scalar_select %p26, 0, %s25
      %s28 = sadd.s32 1, %s19
      %s29 = scalar_select %p26, %s28, %s19
      %p30 = scmp.ge.s32.totalorder %s29, 2
      %s31 = scalar_select %p30, 0, %s29
      %s32 = ssub.s32 %s19, %s31
      %s33 = ssub.s32 %s20, %s27
      %s34 = sor.u32 %s32, %s33
      %p35 = scmp.eq.s32.totalorder %s34, 0
      %s37 = sadd.s32 %s36, 1
      %s38 = scalar_select %p35, %s36, %s37
      %p41 = pneg %p35
      %p42 = scmp.eq.s32.totalorder %s12, 1
      %p43 = por %p41, %p42
      %p44 = scmp.ne.s32.totalorder %s36, %s39
      %p45 = scmp.eq.s32.totalorder %s12, 0
      %p46 = por %p44, %p45
      %p47 = scmp.ne.s32.totalorder %s36, %s39
      %p48 = scmp.eq.s32.totalorder %s17, 1
      %p49 = por %p47, %p48
      %p50 = scmp.ne.s32.totalorder %s39, %s40
      %p51 = scmp.eq.s32.totalorder %s17, 0
      %p52 = por %p50, %p51
      %p53 = scmp.ne.s32.totalorder %s39, %s40
      %p54 = scmp.eq.s32.totalorder %s18, 1
      %p55 = por %p53, %p54
      %p57 = scmp.ne.s32.totalorder %s40, %s56
      %p58 = scmp.eq.s32.totalorder %s18, 0
      %p59 = por %p57, %p58
      %s61 = sadd.s32 %s60, 1
      %p64 = scmp.eq.s32.totalorder %s12, 1
      %p65 = scmp.ne.s32.totalorder %s60, %s62
      %p66 = scmp.eq.s32.totalorder %s12, 0
      %p67 = por %p65, %p66
      %p68 = scmp.ne.s32.totalorder %s60, %s62
      %p69 = scmp.eq.s32.totalorder %s17, 1
      %p70 = por %p68, %p69
      %p71 = scmp.ne.s32.totalorder %s62, %s63
      %p72 = scmp.eq.s32.totalorder %s17, 0
      %p73 = por %p71, %p72
      %p74 = scmp.ne.s32.totalorder %s62, %s63
      %p75 = scmp.eq.s32.totalorder %s18, 1
      %p76 = por %p74, %p75
      %p78 = scmp.ne.s32.totalorder %s63, %s77
      %p79 = scmp.eq.s32.totalorder %s18, 0
      %p80 = por %p78, %p79
      %s82 = sadd.s32 %s81, 1
      %p85 = scmp.eq.s32.totalorder %s12, 1
      %p86 = scmp.ne.s32.totalorder %s81, %s83
      %p87 = scmp.eq.s32.totalorder %s12, 0
      %p88 = por %p86, %p87
      %p89 = scmp.ne.s32.totalorder %s81, %s83
      %p90 = scmp.eq.s32.totalorder %s17, 1
      %p91 = por %p89, %p90
      %p92 = scmp.ne.s32.totalorder %s83, %s84
      %p93 = scmp.eq.s32.totalorder %s17, 0
      %p94 = por %p92, %p93
      %p95 = scmp.ne.s32.totalorder %s83, %s84
      %p96 = scmp.eq.s32.totalorder %s18, 1
      %p97 = por %p95, %p96
      %p99 = scmp.ne.s32.totalorder %s84, %s98
      %p100 = scmp.eq.s32.totalorder %s18, 0
      %p101 = por %p99, %p100
      %s102 = ssub.s32 %s19, %s31
      %s103 = ssub.s32 %s20, %s27
      %s104 = sor.u32 %s102, %s103
      %p105 = scmp.eq.s32.totalorder %s104, 0
      %s107 = sadd.s32 %s106, 1
      %s108 = scalar_select %p105, %s106, %s107
      %p111 = pneg %p105
      %p112 = scmp.eq.s32.totalorder %s12, 1
      %p113 = por %p111, %p112
      %p114 = scmp.ne.s32.totalorder %s106, %s109
      %p115 = scmp.eq.s32.totalorder %s12, 0
      %p116 = por %p114, %p115
      %p117 = scmp.ne.s32.totalorder %s106, %s109
      %p118 = scmp.eq.s32.totalorder %s17, 1
      %p119 = por %p117, %p118
      %p120 = scmp.ne.s32.totalorder %s109, %s110
      %p121 = scmp.eq.s32.totalorder %s17, 0
      %p122 = por %p120, %p121
      %p123 = scmp.ne.s32.totalorder %s109, %s110
      %p124 = scmp.eq.s32.totalorder %s18, 1
      %p125 = por %p123, %p124
      %p127 = scmp.ne.s32.totalorder %s110, %s126
      %p128 = scmp.eq.s32.totalorder %s18, 0
      %p129 = por %p127, %p128
      %p130 = scmp.le.s32.totalorder 1, %s12
      %p131 = scmp.lt.s32.totalorder %s12, 3
      %p132 = pnand %p130, %p131
      %p133 = pneg %p132
      // Predicated region
      $region9: #{linear_transform.1} parent=5 // pred_check
        _
      $region10: #{linear_transform.1} parent=5 // pred_check_branch
        %135 = sbr.rel (%p132) target = $region12
      $region11: #{linear_transform.1} parent=5 // pred_region
        %s136 = ssub.s32 %s12, 1
        // Predicated region
        $region13: #{linear_transform.1} parent=11 // pred_check
          %p137 = pneg %p73
        $region14: #{linear_transform.1} parent=11 // pred_check_branch
          %139 = sbr.rel (%p137) target = $region16
        $region15: #{linear_transform.1} parent=11 // pred_region
          _
        $region16: #{linear_transform.1} parent=11 // pred_fallthru
          _
        // Predicated region
        $region17: #{linear_transform.1} parent=11 // pred_check
          %p140 = pneg %p94
        $region18: #{linear_transform.1} parent=11 // pred_check_branch
          %142 = sbr.rel (%p140) target = $region20
        $region19: #{linear_transform.1} parent=11 // pred_region
          _
        $region20: #{linear_transform.1} parent=11 // pred_fallthru
          _
      $region12: #{linear_transform.1} parent=5 // pred_fallthru
        _
      %p143 = scmp.lt.s32.totalorder %s12, 2
      // Predicated region
      $region21: #{linear_transform.1} parent=5 // pred_check
        %p144 = pneg %p143
      $region22: #{linear_transform.1} parent=5 // pred_check_branch
        %146 = sbr.rel (%p144) target = $region24
      $region23: #{linear_transform.1} parent=5 // pred_region
        // Predicated region
        $region25: #{linear_transform.1} parent=23 // pred_check
          %p147 = pneg %p46
        $region26: #{linear_transform.1} parent=23 // pred_check_branch
          %149 = sbr.rel (%p147) target = $region28
        $region27: #{linear_transform.1} parent=23 // pred_region
          %s150 = sand.u32 %s36, 1
          %s151 = scalar_lea.sflag [#allocation3], %s150
          %s152 = sand.u32 %s36, 1
          %s153 = smul.addr %s152, 128
          %s154 = scalar_lea.vmem [#allocation2], %s153
          %s155 = smul.u32 16, %s20
          %s157 = ssub.s32 2048, 2048
          %158 = vsyncadd %s151, %s157
          %s159 = smul.addr %s19, 16
          %s160 = sadd.s32 %s155, %s159
          %s161 = smul.addr %s160, 128
          %s162 = scalar_lea.hbm %s0, %s161
          %s163 = sshll.u32 %s154, 4
          %s164 = int_to_ptr.vmem [resolvable:$true] %s163
          %169 = dma.hbm_to_vmem [thread:$0]  %s162, 2048, %s164, %s151, 128, 128, 8
        $region28: #{linear_transform.1} parent=23 // pred_fallthru
          _
      $region24: #{linear_transform.1} parent=5 // pred_fallthru
        _
      %p170 = scmp.le.s32.totalorder 1, %s12
      %p171 = scmp.lt.s32.totalorder %s12, 3
      %p172 = pnand %p170, %p171
      %p173 = pneg %p172
      // Predicated region
      $region29: #{linear_transform.1} parent=5 // pred_check
        _
      $region30: #{linear_transform.1} parent=5 // pred_check_branch
        %175 = sbr.rel (%p172) target = $region32
      $region31: #{linear_transform.1} parent=5 // pred_region
        %s176 = ssub.s32 %s12, 1
        %s177 = sand.u32 %s39, 1
        %s178 = scalar_lea.sflag [#allocation3], %s177
        %s179 = sand.u32 %s39, 1
        %s180 = smul.addr %s179, 128
        %s181 = scalar_lea.vmem [#allocation2], %s180
        // Predicated region
        $region33: #{linear_transform.1} parent=31 // pred_check
          %p182 = pneg %p52
        $region34: #{linear_transform.1} parent=31 // pred_check_branch
          %184 = sbr.rel (%p182) target = $region36
        $region35: #{linear_transform.1} parent=31 // pred_region
          %185 = dma.done %s178, 2048
        $region36: #{linear_transform.1} parent=31 // pred_fallthru
          _
        %s186 = sand.u32 %s39, 1
        %s187 = scalar_lea.sflag [#allocation3], %s186
        %s188 = sand.u32 %s39, 1
        %s189 = smul.addr %s188, 128
        %s190 = scalar_lea.vmem [#allocation2], %s189
        %p191 = pneg %p52
        %p192 = pneg %p49
        %p193 = pneg %p73
        %p194 = pneg %p70
        %p195 = pneg %p94
        %p196 = pneg %p91
        %p197 = pneg %p122
        %p198 = pneg %p119
        %p199 = scmp.lt.s32.totalorder %s21, 1
        %s200 = scalar_select %p199, %s21, 1
        %p201 = scmp.lt.s32.totalorder %s22, 0
        %s202 = scalar_select %p201, %s22, 0
        %s203 = smul.addr %s200, 8
        %s204 = sadd.s32 %s202, %s203
        %s205 = smul.addr %s204, 8
        %s206 = scalar_lea.vmem %s3, %s205
        %s207 = smul.u32 16, %s22
        %p208 = scmp.lt.s32.totalorder %s21, 1
        %s209 = scalar_select %p208, %s21, 1
        %p210 = scmp.lt.s32.totalorder %s22, 0
        %s211 = scalar_select %p210, %s22, 0
        %s212 = smul.addr %s209, 8
        %s213 = sadd.s32 %s211, %s212
        %s214 = smul.addr %s213, 8
        %s215 = scalar_lea.vmem %s3, %s214
        %v216 = vld [vmem:[%s1] sm:$0xff]
        %v217 = vld [vmem:[%s1 + $0x8] sm:$0xff]
        %v218 = vld [vmem:[%s1 + $0x10] sm:$0xff]
        %v219 = vld [vmem:[%s1 + $0x18] sm:$0xff]
        %v220 = vld [vmem:[%s1 + $0x20] sm:$0xff]
        %v221 = vld [vmem:[%s1 + $0x28] sm:$0xff]
        %v222 = vld [vmem:[%s1 + $0x30] sm:$0xff]
        %v223 = vld [vmem:[%s1 + $0x38] sm:$0xff]
        %v224 = vld [vmem:[%s181] sm:$0xff]
        %v225 = vld [vmem:[%s181 + $0x8] sm:$0xff]
        %v226 = vld [vmem:[%s181 + $0x10] sm:$0xff]
        %v227 = vld [vmem:[%s181 + $0x18] sm:$0xff]
        %v228 = vld [vmem:[%s181 + $0x20] sm:$0xff]
        %v229 = vld [vmem:[%s181 + $0x28] sm:$0xff]
        %v230 = vld [vmem:[%s181 + $0x30] sm:$0xff]
        %v231 = vld [vmem:[%s181 + $0x38] sm:$0xff]
        %v232 = vld [vmem:[%s181 + $0x40] sm:$0xff]
        %v233 = vld [vmem:[%s181 + $0x48] sm:$0xff]
        %v234 = vld [vmem:[%s181 + $0x50] sm:$0xff]
        %v235 = vld [vmem:[%s181 + $0x58] sm:$0xff]
        %v236 = vld [vmem:[%s181 + $0x60] sm:$0xff]
        %v237 = vld [vmem:[%s181 + $0x68] sm:$0xff]
        %v238 = vld [vmem:[%s181 + $0x70] sm:$0xff]
        %v239 = vld [vmem:[%s181 + $0x78] sm:$0xff]
        %v240 = vld [vmem:[%s2] sm:$0xff]
        %v241 = vld [vmem:[%s2 + $0x8] sm:$0xff]
        %v242 = vld [vmem:[%s2 + $0x10] sm:$0xff]
        %v243 = vld [vmem:[%s2 + $0x18] sm:$0xff]
        %v244 = vld [vmem:[%s2 + $0x20] sm:$0xff]
        %v245 = vld [vmem:[%s2 + $0x28] sm:$0xff]
        %v246 = vld [vmem:[%s2 + $0x30] sm:$0xff]
        %v247 = vld [vmem:[%s2 + $0x38] sm:$0xff]
        %249 = vset.pattern.permute.xlu0 0
        %250 = vperm.xlu0 %249, %v240
        %v251 = vpop.permute.xlu0 %250
        %254 = vset.pattern.permute.xlu0 0
        %255 = vperm.xlu0 %254, %v241
        %v256 = vpop.permute.xlu0 %255
        %259 = vset.pattern.permute.xlu0 0
        %260 = vperm.xlu0 %259, %v242
        %v261 = vpop.permute.xlu0 %260
        %264 = vset.pattern.permute.xlu0 0
        %265 = vperm.xlu0 %264, %v243
        %v266 = vpop.permute.xlu0 %265
        %269 = vset.pattern.permute.xlu0 0
        %270 = vperm.xlu0 %269, %v244
        %v271 = vpop.permute.xlu0 %270
        %274 = vset.pattern.permute.xlu0 0
        %275 = vperm.xlu0 %274, %v245
        %v276 = vpop.permute.xlu0 %275
        %279 = vset.pattern.permute.xlu0 0
        %280 = vperm.xlu0 %279, %v246
        %v281 = vpop.permute.xlu0 %280
        %284 = vset.pattern.permute.xlu0 0
        %285 = vperm.xlu0 %284, %v247
        %v286 = vpop.permute.xlu0 %285
        %vm288 = vcmask 261120
        %v290 = vsel %vm288, %v216, 0
        %v293 = vsel %vm288, %v217, 0
        %v296 = vsel %vm288, %v218, 0
        %v299 = vsel %vm288, %v219, 0
        %v302 = vsel %vm288, %v220, 0
        %v305 = vsel %vm288, %v221, 0
        %v308 = vsel %vm288, %v222, 0
        %v311 = vsel %vm288, %v223, 0
        %v314 = vsel %vm288, %v224, 0
        %v317 = vsel %vm288, %v225, 0
        %v320 = vsel %vm288, %v226, 0
        %v323 = vsel %vm288, %v227, 0
        %v326 = vsel %vm288, %v228, 0
        %v329 = vsel %vm288, %v229, 0
        %v332 = vsel %vm288, %v230, 0
        %v335 = vsel %vm288, %v231, 0
        %v338 = vsel %vm288, %v232, 0
        %v341 = vsel %vm288, %v233, 0
        %v344 = vsel %vm288, %v234, 0
        %v347 = vsel %vm288, %v235, 0
        %v350 = vsel %vm288, %v236, 0
        %v353 = vsel %vm288, %v237, 0
        %v356 = vsel %vm288, %v238, 0
        %v359 = vsel %vm288, %v239, 0
        %361 = vmatprep.subr.mxu0 0.0
        %362 = vmatpush1.xpose.msra.mxu0 %v314
        %363 = vmatprep.subr.mxu0 0.0
        %364 = vmatpush1.xpose.msra.mxu0 %v317
        %365 = vmatprep.subr.mxu0 0.0
        %366 = vmatpush1.xpose.msra.mxu0 %v320
        %367 = vmatprep.subr.mxu0 0.0
        %368 = vmatpush1.xpose.msra.mxu0 %v323
        %369 = vmatprep.subr.mxu0 0.0
        %370 = vmatpush1.xpose.msra.mxu0 %v326
        %371 = vmatprep.subr.mxu0 0.0
        %372 = vmatpush1.xpose.msra.mxu0 %v329
        %373 = vmatprep.subr.mxu0 0.0
        %374 = vmatpush1.xpose.msra.mxu0 %v332
        %375 = vmatprep.subr.mxu0 0.0
        %376 = vmatpush1.xpose.msra.mxu0 %v335
        %377 = vmatprep.subr.mxu0 0.0
        %378 = vmatpush1.xpose.msra.mxu0 %v338
        %379 = vmatprep.subr.mxu0 0.0
        %380 = vmatpush1.xpose.msra.mxu0 %v341
        %381 = vmatprep.subr.mxu0 0.0
        %382 = vmatpush1.xpose.msra.mxu0 %v344
        %383 = vmatprep.subr.mxu0 0.0
        %384 = vmatpush1.xpose.msra.mxu0 %v347
        %385 = vmatprep.subr.mxu0 0.0
        %386 = vmatpush1.xpose.msra.mxu0 %v350
        %387 = vmatprep.subr.mxu0 0.0
        %388 = vmatpush1.xpose.msra.mxu0 %v353
        %389 = vmatprep.subr.mxu0 0.0
        %390 = vmatpush1.xpose.msra.mxu0 %v356
        %391 = vmatprep.subr.mxu0 0.0
        %392 = vmatpush1.xpose.msra.mxu0 %v359
        %393 = vmatprep.subr.mxu0 0.0
        %394 = vmatpush1.xpose.msra.mxu0 0.0
        %395 = vmatprep.subr.mxu0 0.0
        %396 = vmatpush1.xpose.msra.mxu0 0.0
        %397 = vmatprep.subr.mxu0 0.0
        %398 = vmatpush1.xpose.msra.mxu0 0.0
        %399 = vmatprep.subr.mxu0 0.0
        %400 = vmatpush1.xpose.msra.mxu0 0.0
        %401 = vmatprep.subr.mxu0 0.0
        %402 = vmatpush1.xpose.msra.mxu0 0.0
        %403 = vmatprep.subr.mxu0 0.0
        %404 = vmatpush1.xpose.msra.mxu0 0.0
        %405 = vmatprep.subr.mxu0 0.0
        %406 = vmatpush1.xpose.msra.mxu0 0.0
        %407 = vmatprep.subr.mxu0 0.0
        %408 = vmatpush1.xpose.msra.mxu0 0.0
        %409 = vmatprep.subr.mxu0 0.0
        %410 = vmatpush1.xpose.msra.mxu0 0.0
        %411 = vmatprep.subr.mxu0 0.0
        %412 = vmatpush1.xpose.msra.mxu0 0.0
        %413 = vmatprep.subr.mxu0 0.0
        %414 = vmatpush1.xpose.msra.mxu0 0.0
        %415 = vmatprep.subr.mxu0 0.0
        %416 = vmatpush1.xpose.msra.mxu0 0.0
        %417 = vmatprep.subr.mxu0 0.0
        %418 = vmatpush1.xpose.msra.mxu0 0.0
        %419 = vmatprep.subr.mxu0 0.0
        %420 = vmatpush1.xpose.msra.mxu0 0.0
        %421 = vmatprep.subr.mxu0 0.0
        %422 = vmatpush1.xpose.msra.mxu0 0.0
        %423 = vmatprep.subr.mxu0 0.0
        %424 = vmatpush1.xpose.msra.mxu0 0.0
        %425 = vmatprep.mubr.f32.mxu0 0.0
        %426 = vmatmul.mubr.f32.gmra.mrb[0].mxu0 %v290
        %v427 = vpop.f32.mrb[0].mxu0
        %v428 = vadd.f32 %v251, %v427
        %v429 = vpop.f32.mrb[0].mxu0
        %430 = vmatprep.mubr.f32.mxu0 0.0
        %431 = vmatmul.mubr.f32.gmra.mrb[0].mxu0 %v293
        %v432 = vpop.f32.mrb[0].mxu0
        %v433 = vadd.f32 %v256, %v432
        %v434 = vpop.f32.mrb[0].mxu0
        %435 = vmatprep.mubr.f32.mxu0 0.0
        %436 = vmatmul.mubr.f32.gmra.mrb[0].mxu0 %v296
        %v437 = vpop.f32.mrb[0].mxu0
        %v438 = vadd.f32 %v261, %v437
        %v439 = vpop.f32.mrb[0].mxu0
        %440 = vmatprep.mubr.f32.mxu0 0.0
        %441 = vmatmul.mubr.f32.gmra.mrb[0].mxu0 %v299
        %v442 = vpop.f32.mrb[0].mxu0
        %v443 = vadd.f32 %v266, %v442
        %v444 = vpop.f32.mrb[0].mxu0
        %445 = vmatprep.mubr.f32.mxu0 0.0
        %446 = vmatmul.mubr.f32.gmra.mrb[0].mxu0 %v302
        %v447 = vpop.f32.mrb[0].mxu0
        %v448 = vadd.f32 %v271, %v447
        %v449 = vpop.f32.mrb[0].mxu0
        %450 = vmatprep.mubr.f32.mxu0 0.0
        %451 = vmatmul.mubr.f32.gmra.mrb[0].mxu0 %v305
        %v452 = vpop.f32.mrb[0].mxu0
        %v453 = vadd.f32 %v276, %v452
        %v454 = vpop.f32.mrb[0].mxu0
        %455 = vmatprep.mubr.f32.mxu0 0.0
        %456 = vmatmul.mubr.f32.gmra.mrb[0].mxu0 %v308
        %v457 = vpop.f32.mrb[0].mxu0
        %v458 = vadd.f32 %v281, %v457
        %v459 = vpop.f32.mrb[0].mxu0
        %460 = vmatprep.mubr.f32.mxu0 0.0
        %461 = vmatmul.mubr.f32.gmra.mrb[0].mxu0 %v311
        %v462 = vpop.f32.mrb[0].mxu0
        %v463 = vadd.f32 %v286, %v462
        %v464 = vpop.f32.mrb[0].mxu0
        %465 = vdwg.mxu0
        %466 = vst [vmem:[%s215] sm:$0xff] %v428
        %467 = vst [vmem:[%s215 + $0x8] sm:$0xff] %v433
        %468 = vst [vmem:[%s215 + $0x10] sm:$0xff] %v438
        %469 = vst [vmem:[%s215 + $0x18] sm:$0xff] %v443
        %470 = vst [vmem:[%s215 + $0x20] sm:$0xff] %v448
        %471 = vst [vmem:[%s215 + $0x28] sm:$0xff] %v453
        %472 = vst [vmem:[%s215 + $0x30] sm:$0xff] %v458
        %473 = vst [vmem:[%s215 + $0x38] sm:$0xff] %v463
        %p474 = scmp.lt.s32.totalorder %s21, 1
        %s475 = scalar_select %p474, %s21, 1
        %p476 = scmp.lt.s32.totalorder %s22, 0
        %s477 = scalar_select %p476, %s22, 0
        %s478 = smul.addr %s475, 8
        %s479 = sadd.s32 %s477, %s478
        %s480 = smul.addr %s479, 8
        %s481 = scalar_lea.vmem %s3, %s480
        // Predicated region
        $region37: #{linear_transform.1} parent=31 // pred_check
          %p482 = pneg %p119
        $region38: #{linear_transform.1} parent=31 // pred_check_branch
          %484 = sbr.rel (%p482) target = $region40
        $region39: #{linear_transform.1} parent=31 // pred_region
          _
        $region40: #{linear_transform.1} parent=31 // pred_fallthru
          _
      $region32: #{linear_transform.1} parent=5 // pred_fallthru
        _
      %p485 = scmp.le.s32.totalorder 2, %s12
      // Predicated region
      $region41: #{linear_transform.1} parent=5 // pred_check
        %p486 = pneg %p485
      $region42: #{linear_transform.1} parent=5 // pred_check_branch
        %488 = sbr.rel (%p486) target = $region44
      $region43: #{linear_transform.1} parent=5 // pred_region
        %s489 = ssub.s32 %s12, 2
        // Predicated region
        $region45: #{linear_transform.1} parent=43 // pred_check
          %p490 = pneg %p125
        $region46: #{linear_transform.1} parent=43 // pred_check_branch
          %492 = sbr.rel (%p490) target = $region48
        $region47: #{linear_transform.1} parent=43 // pred_region
          %p493 = scmp.lt.s32.totalorder %s23, 1
          %s494 = scalar_select %p493, %s23, 1
          %p495 = scmp.lt.s32.totalorder %s24, 0
          %s496 = scalar_select %p495, %s24, 0
          %s497 = smul.addr %s494, 8
          %s498 = sadd.s32 %s496, %s497
          %s499 = smul.addr %s498, 8
          %s500 = scalar_lea.vmem %s3, %s499
        $region48: #{linear_transform.1} parent=43 // pred_fallthru
          _
      $region44: #{linear_transform.1} parent=5 // pred_fallthru
        _
    $region6: #{linear_transform.1} parent=1 // loop_footer
      %s16 = sadd.s32 1, %s12
    $region7: #{linear_transform.1} parent=1 // loop_footer_branch
      %11 = sbr.rel target = $region3
    $region8: #{linear_transform.1} parent=1 // loop_exit
      _
    %501 = vsyncpa [#allocation3], 1
    %s502 = scalar_lea.sflag [#allocation3], 1
    %503 = vsyncpa %s502, 1

</llo_original>
